<compile_context>
chip_gen: v6e
topology: v6e:2x2x1
jax: 0.10.0
libtpu: 0.0.40
codegen_flags: <defaults>
</compile_context>

<pallas_src>
import functools

import jax
import jax.numpy as jnp
import numpy as np
from jax.experimental import pallas as pl
from jax.experimental.pallas import tpu as pltpu

KSIZE = 3
# (oi, oj) offsets of the 3x3 window, flattened as k = di*3 + dj (di=oi+1, dj=oj+1)
_OFFSETS = tuple((di - 1, dj - 1) for di in range(3) for dj in range(3))


def _vmem_limit(est_bytes):
    # generous but safe on every generation (v7x physical VMEM is 64 MiB)
    return int(min(max(2 * est_bytes, 16 * 1024 * 1024), 48 * 1024 * 1024))


# ---------------------------------------------------------------------------
# Kernel 1: fused 1x1 convolution(s) == row-tiled matmul + bias
# ---------------------------------------------------------------------------
def _proj_kernel(x_ref, w_ref, b_ref, o_ref):
    o_ref[...] = (
        jnp.dot(x_ref[...], w_ref[...], preferred_element_type=jnp.float32)
        + b_ref[...]
    ).astype(o_ref.dtype)


def conv1x1_pallas(x_rows, weight_t, bias_row, *, tile_m=512):
    """(M, Cin) @ (Cin, Cout) + (1, Cout) -> (M, Cout), tiled over pixel rows."""
    M, Cin = x_rows.shape
    Cout = weight_t.shape[1]
    tm = min(tile_m, M)
    est = 4 * (2 * tm * (Cin + Cout) + Cin * Cout + Cout)
    return pl.pallas_call(
        _proj_kernel,
        out_shape=jax.ShapeDtypeStruct((M, Cout), jnp.float32),
        grid=(pl.cdiv(M, tm),),
        in_specs=[
            pl.BlockSpec((tm, Cin), lambda i: (i, 0)),
            pl.BlockSpec((Cin, Cout), lambda i: (0, 0)),
            pl.BlockSpec((1, Cout), lambda i: (0, 0)),
        ],
        out_specs=pl.BlockSpec((tm, Cout), lambda i: (i, 0)),
        compiler_params=pltpu.CompilerParams(
            dimension_semantics=("parallel",),
            vmem_limit_bytes=_vmem_limit(est),
        ),
        cost_estimate=pl.CostEstimate(
            flops=2 * M * Cin * Cout,
            transcendentals=0,
            bytes_accessed=4 * (M * Cin + Cin * Cout + M * Cout),
        ),
    )(x_rows, weight_t, bias_row)


# ---------------------------------------------------------------------------
# Kernel 2: per-batch contextual attention, tiled over query rows.
#   grid = (B, H // TH); w/raw patch columns + padded f plane are built once
#   per batch (qt == 0) into VMEM scratch; each query tile computes scores,
#   masked scaled softmax, the transposed-conv matmul and overlap-adds its
#   contribution into a padded accumulator that is written out at the last
#   query tile.
# ---------------------------------------------------------------------------
def _atn_kernel(f_ref, w_ref, raw_ref, mm_ref, o_ref,
                pad_ref, wcols_ref, rawcols_ref, ftile_ref, acc_ref,
                *, H, W, C, TH, scale):
    L = H * W
    TQ = TH * W                      # query rows per tile (multiple of W)
    base = W + 1                     # zero-pad rows in the flattened plane
    qt = pl.program_id(1)

    def mask_oj(p, lj, oj):
        # zero out taps whose 3x3 window crosses the left/right image edge
        if oj == -1:
            return jnp.where(lj >= 1, p, 0.0)
        if oj == 1:
            return jnp.where(lj <= W - 2, p, 0.0)
        return p

    # ------------------------------------------------------------------ init
    @pl.when(qt == 0)
    def _init():
        acc_ref[...] = jnp.zeros_like(acc_ref)
        pad_ref[...] = jnp.zeros_like(pad_ref)
        lj = jax.lax.broadcasted_iota(jnp.int32, (L, 1), 0) % W

        # w patch columns (im2col in VMEM), L2-normalised, softmax scale folded
        pad_ref[base:base + L, :] = w_ref[...]
        sq = jnp.zeros((L, 1), jnp.float32)
        for k, (oi, oj) in enumerate(_OFFSETS):
            off = oi * W + oj
            p = mask_oj(pad_ref[base + off:base + off + L, :], lj, oj)
            wcols_ref[:, k * C:(k + 1) * C] = p
            sq = sq + jnp.sum(p * p, axis=-1, keepdims=True)
        inv = scale / jnp.maximum(jnp.sqrt(sq), 1e-4)        # escape_NaN = 1e-4
        wcols_ref[...] = wcols_ref[...] * inv

        # raw x1 patch columns (transposed-conv filters)
        pad_ref[base:base + L, :] = raw_ref[...]
        for k, (oi, oj) in enumerate(_OFFSETS):
            off = oi * W + oj
            p = mask_oj(pad_ref[base + off:base + off + L, :], lj, oj)
            rawcols_ref[:, k * C:(k + 1) * C] = p

        # f (query) plane stays resident in the padded scratch for all q-tiles
        pad_ref[base:base + L, :] = f_ref[...]

    # ------------------------------------------------------------ query tile
    row0 = qt * TQ
    ljt = jax.lax.broadcasted_iota(jnp.int32, (TQ, 1), 0) % W   # TQ % W == 0

    # im2col of the f tile: 9 shifted views of the padded, flattened f plane
    for k, (oi, oj) in enumerate(_OFFSETS):
        p = pad_ref[pl.ds(base + row0 + oi * W + oj, TQ), :]
        ftile_ref[:, k * C:(k + 1) * C] = mask_oj(p, ljt, oj)

    mm = mm_ref[...]                                            # (1, L) 0/1 mask
    # correlation scores; 1/||w|| and softmax_scale already folded into wcols
    logits = jax.lax.dot_general(
        ftile_ref[...], wcols_ref[...], (((1,), (1,)), ((), ())),
        preferred_element_type=jnp.float32) * mm                # (TQ, L)
    m = jnp.max(logits, axis=-1, keepdims=True)
    e = jnp.exp(logits - m)
    attn = e * pl.reciprocal(jnp.sum(e, axis=-1, keepdims=True), approx=True)
    attn = jnp.maximum(attn * mm, 1e-8)                         # mask + clamp

    # transposed-conv hot matmul (weighted sum of raw x1 patches), /4 as torch
    out_cols = jnp.dot(attn, rawcols_ref[...],
                       preferred_element_type=jnp.float32) * 0.25   # (TQ, 9C)

    # col2im: overlap-add the 9 sub-columns into the padded accumulator
    for k, (oi, oj) in enumerate(_OFFSETS):
        piece = mask_oj(out_cols[:, k * C:(k + 1) * C], ljt, oj)
        sl = pl.ds(base + row0 + oi * W + oj, TQ)
        acc_ref[sl, :] = acc_ref[sl, :] + piece

    # ---------------------------------------------------------------- finish
    @pl.when(qt == pl.num_programs(1) - 1)
    def _finish():
        o_ref[...] = acc_ref[base:base + L, :].astype(o_ref.dtype)


# ---------------------------------------------------------------------------
# Tiny plain-JAX glue
# ---------------------------------------------------------------------------
# TODO(synk): the 3x3 mask-mean and the NCHW<->channels-last transposes stay as
# plain-JAX glue (negligible traffic compared to the attention kernel).
def _mask_mm(mask_nchw):
    """(B,1,H,W) -> (B,1,H*W): (mean of zero-padded 3x3 patch > 0.5) as float."""
    B, _, H, W = mask_nchw.shape
    m = mask_nchw[:, 0]
    mp = jnp.pad(m, ((0, 0), (1, 1), (1, 1)))
    s = sum(mp[:, di:di + H, dj:dj + W] for di in range(3) for dj in range(3)) / 9.0
    return (s > 0.5).astype(jnp.float32).reshape(B, 1, H * W)


# ---------------------------------------------------------------------------
# Forward pass (mirrors AtnConv2.forward with ksize=3, stride=1)
# ---------------------------------------------------------------------------
def atn_conv2_forward(x1, x2, mask, params, softmax_scale=10.0):
    B, Cin, H, W = x1.shape
    Cout = params["rw_w"].shape[0]
    L = H * W
    M = B * L

    # NCHW -> channels-last pixel rows, read once per input
    x1_rows = jnp.transpose(x1, (0, 2, 3, 1)).reshape(M, Cin)
    x2_rows = jnp.transpose(x2, (0, 2, 3, 1)).reshape(M, Cin)

    # rw projection of x1; f & w projections of x2 fused into a single matmul
    x1r = conv1x1_pallas(x1_rows, params["rw_w"].T, params["rw_b"].reshape(1, Cout))
    fw_w = jnp.concatenate([params["f_w"].T, params["w_w"].T], axis=1)   # (Cin, 2C)
    fw_b = jnp.concatenate([params["f_b"], params["w_b"]]).reshape(1, 2 * Cout)
    fw = conv1x1_pallas(x2_rows, fw_w, fw_b)                             # (M, 2C)

    f2 = fw[:, :Cout].reshape(B, L, Cout)
    w2 = fw[:, Cout:].reshape(B, L, Cout)
    x1r = x1r.reshape(B, L, Cout)
    mm = _mask_mm(mask)                                                  # (B,1,L)

    # query-row tiling: whole image rows per tile, TQ = TH*W ~<= 512 rows
    TH = 1
    for cand in range(min(H, max(1, 512 // W)), 0, -1):
        if H % cand == 0:
            TH = cand
            break
    TQ = TH * W
    nqt = H // TH
    K = 9 * Cout

    est = 4 * (
        2 * (4 * L * Cout + L)                 # double-buffered in/out blocks
        + 2 * (L + 2 * W + 2) * Cout           # padded plane + col2im accumulator
        + 2 * L * K + TQ * K                   # patch-column scratches + f tile
        + 4 * TQ * L + TQ * K                  # logits / exp / attn / out_cols temps
    )

    out_cols = pl.pallas_call(
        functools.partial(_atn_kernel, H=H, W=W, C=Cout, TH=TH,
                          scale=float(softmax_scale)),
        out_shape=jax.ShapeDtypeStruct((B, L, Cout), jnp.float32),
        grid=(B, nqt),
        in_specs=[
            pl.BlockSpec((None, L, Cout), lambda b, q: (b, 0, 0)),   # f
            pl.BlockSpec((None, L, Cout), lambda b, q: (b, 0, 0)),   # w
            pl.BlockSpec((None, L, Cout), lambda b, q: (b, 0, 0)),   # raw (x1r)
            pl.BlockSpec((None, 1, L), lambda b, q: (b, 0, 0)),      # mm
        ],
        out_specs=pl.BlockSpec((None, L, Cout), lambda b, q: (b, 0, 0)),
        scratch_shapes=[
            pltpu.VMEM((L + 2 * W + 2, Cout), jnp.float32),   # padded f plane
            pltpu.VMEM((L, K), jnp.float32),                  # normalised w cols
            pltpu.VMEM((L, K), jnp.float32),                  # raw x1 cols
            pltpu.VMEM((TQ, K), jnp.float32),                 # f patch-col tile
            pltpu.VMEM((L + 2 * W + 2, Cout), jnp.float32),   # col2im accumulator
        ],
        compiler_params=pltpu.CompilerParams(
            dimension_semantics=("parallel", "arbitrary"),
            vmem_limit_bytes=_vmem_limit(est),
        ),
        cost_estimate=pl.CostEstimate(
            flops=4 * B * L * L * K,
            transcendentals=B * L * L,
            bytes_accessed=4 * (4 * B * L * Cout + B * L),
        ),
    )(f2, w2, x1r, mm)

    y_nhwc = out_cols.reshape(B, H, W, Cout)
    return jnp.transpose(y_nhwc, (0, 3, 1, 2))                # back to NCHW


# ---------------------------------------------------------------------------
# Pure-JAX reference (direct translation of the torch forward) for validation
# ---------------------------------------------------------------------------
def reference_forward(x1, x2, mask, params, softmax_scale=10.0):
    def conv1x1(x, w, b):
        return jnp.einsum("bchw,oc->bohw", x, w) + b[None, :, None, None]

    x1r = conv1x1(x1, params["rw_w"], params["rw_b"])
    f2 = conv1x1(x2, params["f_w"], params["f_b"])
    w2 = conv1x1(x2, params["w_w"], params["w_b"])
    B, C, H, W = x1r.shape
    L = H * W

    def patches(x_nchw):          # -> (B, L, C, 3, 3), torch extract_patches + view
        xn = jnp.transpose(x_nchw, (0, 2, 3, 1))
        xp = jnp.pad(xn, ((0, 0), (1, 1), (1, 1), (0, 0)))
        cols = [xp[:, di:di + H, dj:dj + W, :] for di in range(3) for dj in range(3)]
        p = jnp.stack(cols, axis=-1).reshape(B, H, W, C, 3, 3)
        return p.reshape(B, L, C, 3, 3)

    raw_w = patches(x1r)
    wpat = patches(w2)
    mmask = _mask_mm(mask)[:, 0, :]                 # (B, L)

    dn = ("NCHW", "OIHW", "NCHW")
    outs = []
    for b in range(B):
        wi = wpat[b]
        norm = jnp.sqrt(jnp.sum(wi * wi, axis=(1, 2, 3), keepdims=True))
        wi_n = wi / jnp.maximum(norm, 1e-4)
        xi = f2[b:b + 1]
        yi = jax.lax.conv_general_dilated(
            xi, wi_n, (1, 1), ((1, 1), (1, 1)), dimension_numbers=dn,
            precision=jax.lax.Precision.HIGHEST)    # (1, L, H, W)
        mi = mmask[b].reshape(1, L, 1, 1)
        yi = yi * mi
        yi = jax.nn.softmax(yi * softmax_scale, axis=1)
        yi = yi * mi
        yi = jnp.maximum(yi, 1e-8)
        wc = raw_w[b]

        # F.conv_transpose2d(yi, wc, stride=1, padding=1) == input-gradient of
        # conv2d(a, wc, padding=1); compute it exactly via vjp.
        def fwd(a, wc=wc):
            return jax.lax.conv_general_dilated(
                a, wc, (1, 1), ((1, 1), (1, 1)), dimension_numbers=dn,
                precision=jax.lax.Precision.HIGHEST)

        _, vjp_fn = jax.vjp(fwd, jnp.zeros((1, C, H, W), x1r.dtype))
        (out_b,) = vjp_fn(yi)
        outs.append(out_b / 4.0)
    return jnp.concatenate(outs, axis=0)


if __name__ == "__main__":
    B, Cin, Cout, H, W = 2, 16, 8, 8, 8

    key = jax.random.PRNGKey(0)
    ks = jax.random.split(key, 9)
    scale = 1.0 / np.sqrt(Cin)
    params = {
        "rw_w": jax.random.normal(ks[0], (Cout, Cin), jnp.float32) * scale,
        "rw_b": jax.random.normal(ks[1], (Cout,), jnp.float32) * 0.01,
        "w_w": jax.random.normal(ks[2], (Cout, Cin), jnp.float32) * scale,
        "w_b": jax.random.normal(ks[3], (Cout,), jnp.float32) * 0.01,
        "f_w": jax.random.normal(ks[4], (Cout, Cin), jnp.float32) * scale,
        "f_b": jax.random.normal(ks[5], (Cout,), jnp.float32) * 0.01,
    }
    x1 = jax.random.normal(ks[6], (B, Cin, H, W), jnp.float32)
    x2 = jax.random.normal(ks[7], (B, Cin, H, W), jnp.float32)
    # mask: 1 indicates holes; a 4x4 hole in the middle
    mask = jnp.zeros((B, 1, H, W), jnp.float32).at[:, :, 2:6, 2:6].set(1.0)

    y = atn_conv2_forward(x1, x2, mask, params)
    y = jax.block_until_ready(y)

    y_ref = reference_forward(x1, x2, mask, params)
    np.testing.assert_allclose(np.asarray(y), np.asarray(y_ref),
                               rtol=5e-2, atol=5e-3)

    print("KERNEL_OK")
</pallas_src>

<mosaic_0001>
module attributes {stable_mosaic.version = 11 : i64} {
  func.func @_proj_kernel(%arg0: i32, %arg1: memref<128x16xf32, #tpu.memory_space<vmem>>, %arg2: memref<16x8xf32, #tpu.memory_space<vmem>>, %arg3: memref<1x8xf32, #tpu.memory_space<vmem>>, %arg4: memref<128x8xf32, #tpu.memory_space<vmem>>) attributes {dimension_semantics = [#tpu.dimension_semantics<parallel>], iteration_bounds = array<i64: 1>, scalar_prefetch = 0 : i64, scratch_operands = 0 : i64, tpu.core_type = #tpu.core_type<tc>, window_params = [{transform_indices = @transform_0, window_bounds = array<i64: 128, 16>}, {pipeline_mode = #tpu.pipeline_mode<synchronous>, transform_indices = @transform_1, window_bounds = array<i64: 16, 8>}, {pipeline_mode = #tpu.pipeline_mode<synchronous>, transform_indices = @transform_2, window_bounds = array<i64: 1, 8>}, {transform_indices = @transform_3, window_bounds = array<i64: 128, 8>}]} {
    %c0 = arith.constant 0 : index
    %c0_0 = arith.constant 0 : index
    %0 = vector.load %arg1[%c0, %c0_0] : memref<128x16xf32, #tpu.memory_space<vmem>>, vector<128x16xf32>
    %c0_1 = arith.constant 0 : index
    %c0_2 = arith.constant 0 : index
    %1 = vector.load %arg2[%c0_1, %c0_2] : memref<16x8xf32, #tpu.memory_space<vmem>>, vector<16x8xf32>
    %cst = arith.constant dense<0.000000e+00> : vector<128x8xf32>
    %2 = tpu.matmul %0, %1, %cst {dimension_numbers = #tpu.dot_dimension_numbers<[1], [0], [0], [1], [0, 0, 1, 1], [], []>} : vector<128x16xf32>, vector<16x8xf32>, vector<128x8xf32> -> vector<128x8xf32>
    %c0_3 = arith.constant 0 : index
    %c0_4 = arith.constant 0 : index
    %3 = vector.load %arg3[%c0_3, %c0_4] : memref<1x8xf32, #tpu.memory_space<vmem>>, vector<1x8xf32>
    %4 = vector.broadcast %3 : vector<1x8xf32> to vector<128x8xf32>
    %5 = arith.addf %2, %4 : vector<128x8xf32>
    %c0_5 = arith.constant 0 : index
    %c0_6 = arith.constant 0 : index
    %6 = vector.load %arg4[%c0_5, %c0_6] : memref<128x8xf32, #tpu.memory_space<vmem>>, vector<128x8xf32>
    tpu.vector_store %arg4[%c0_5, %c0_6], %5 {strides = array<i32>} : memref<128x8xf32, #tpu.memory_space<vmem>>, vector<128x8xf32>,
    return
  }
  func.func @transform_0(%arg0: i32) -> (i32, i32) {
    %c0_i32 = arith.constant 0 : i32
    %c0_i32_0 = arith.constant 0 : i32
    return %arg0, %c0_i32 : i32, i32
  }
  func.func @transform_1(%arg0: i32) -> (i32, i32) {
    %c0_i32 = arith.constant 0 : i32
    %c0_i32_0 = arith.constant 0 : i32
    %c0_i32_1 = arith.constant 0 : i32
    return %c0_i32, %c0_i32_0 : i32, i32
  }
  func.func @transform_2(%arg0: i32) -> (i32, i32) {
    %c0_i32 = arith.constant 0 : i32
    %c0_i32_0 = arith.constant 0 : i32
    %c0_i32_1 = arith.constant 0 : i32
    return %c0_i32, %c0_i32_0 : i32, i32
  }
  func.func @transform_3(%arg0: i32) -> (i32, i32) {
    %c0_i32 = arith.constant 0 : i32
    %c0_i32_0 = arith.constant 0 : i32
    return %arg0, %c0_i32 : i32, i32
  }
}

</mosaic_0001>

<llo_original>
// kernel: tpu_custom_call.1
$region0: #{tpu_custom_call.1}
  #allocation0 [shape = 'u32[]', space=smem, size = 0x4, offset = 0x4, fixed_abs, tag = 'smem constant byte address 0x4 - core index']
  #allocation1 [shape = 'u32[144,128]{1,0:T(1,128)}', space=vmem, size = 0x12000, scoped, tag = 'internal scratch']
  %s0 = inlined_call_operand.vmem [shape: f32[128,16], index: 0, kind: input, shape index: {}]
  %s1 = inlined_call_operand.vmem [shape: f32[16,8], index: 1, kind: input, shape index: {}]
  %s2 = inlined_call_operand.vmem [shape: f32[1,8], index: 2, kind: input, shape index: {}]
  %s3 = inlined_call_operand.vmem [shape: f32[128,8], index: 3, kind: output, shape index: {}]
  %s4 = sld [smem:[#allocation0]]
  $region22: #{tpu_custom_call.1} parent=0
    _
  %s6 = ssub.s32 1, %s4
  %s7 = scalar_select 0, %s6, %s4
  // Predicated region
  $region2: #{tpu_custom_call.1} parent=0 // pred_check
    _
  $region3: #{tpu_custom_call.1} parent=0 // pred_check_branch
    %9 = sbr.rel (0) target = $region5
  $region4: #{tpu_custom_call.1} parent=0 // pred_region
    _
  $region5: #{tpu_custom_call.1} parent=0 // pred_fallthru
    _
  // Predicated region
  $region6: #{tpu_custom_call.1} parent=0 // pred_check
    _
  $region7: #{tpu_custom_call.1} parent=0 // pred_check_branch
    %11 = sbr.rel (0) target = $region9
  $region8: #{tpu_custom_call.1} parent=0 // pred_region
    _
  $region9: #{tpu_custom_call.1} parent=0 // pred_fallthru
    _
  // Predicated region
  $region10: #{tpu_custom_call.1} parent=0 // pred_check
    _
  $region11: #{tpu_custom_call.1} parent=0 // pred_check_branch
    %13 = sbr.rel (0) target = $region13
  $region12: #{tpu_custom_call.1} parent=0 // pred_region
    _
  $region13: #{tpu_custom_call.1} parent=0 // pred_fallthru
    _
  %v14 = vld [vmem:[%s0] sm:$0xff]
  %v15 = vld [vmem:[%s0 + $0x8] sm:$0xff]
  %v16 = vld [vmem:[%s0 + $0x10] sm:$0xff]
  %v17 = vld [vmem:[%s0 + $0x18] sm:$0xff]
  %v18 = vld [vmem:[%s0 + $0x20] sm:$0xff]
  %v19 = vld [vmem:[%s0 + $0x28] sm:$0xff]
  %v20 = vld [vmem:[%s0 + $0x30] sm:$0xff]
  %v21 = vld [vmem:[%s0 + $0x38] sm:$0xff]
  %v22 = vld [vmem:[%s0 + $0x40] sm:$0xff]
  %v23 = vld [vmem:[%s0 + $0x48] sm:$0xff]
  %v24 = vld [vmem:[%s0 + $0x50] sm:$0xff]
  %v25 = vld [vmem:[%s0 + $0x58] sm:$0xff]
  %v26 = vld [vmem:[%s0 + $0x60] sm:$0xff]
  %v27 = vld [vmem:[%s0 + $0x68] sm:$0xff]
  %v28 = vld [vmem:[%s0 + $0x70] sm:$0xff]
  %v29 = vld [vmem:[%s0 + $0x78] sm:$0xff]
  %v30 = vld [vmem:[%s1] sm:$0xff]
  %v31 = vld [vmem:[%s1 + $0x8] sm:$0xff]
  %v32 = vld [vmem:[%s2] sm:$0x1]
  %v34 = vlaneseq
  %v35 = vshrl.u32 %v34, 7
  %v36 = vsub.s32 0, %v35
  %v37 = vrot.slane %v32, %v36
  %vm39 = vcmask 130048
  %v41 = vsel %vm39, %v14, 0
  %v44 = vsel %vm39, %v15, 0
  %v47 = vsel %vm39, %v16, 0
  %v50 = vsel %vm39, %v17, 0
  %v53 = vsel %vm39, %v18, 0
  %v56 = vsel %vm39, %v19, 0
  %v59 = vsel %vm39, %v20, 0
  %v62 = vsel %vm39, %v21, 0
  %v65 = vsel %vm39, %v22, 0
  %v68 = vsel %vm39, %v23, 0
  %v71 = vsel %vm39, %v24, 0
  %v74 = vsel %vm39, %v25, 0
  %v77 = vsel %vm39, %v26, 0
  %v80 = vsel %vm39, %v27, 0
  %v83 = vsel %vm39, %v28, 0
  %v86 = vsel %vm39, %v29, 0
  %88 = vmatprep.subr.mxu0 0.0
  %89 = vmatpush1.msra.mxu0 0.0
  %90 = vmatprep.subr.mxu0 0.0
  %91 = vmatpush1.msra.mxu0 0.0
  %92 = vmatprep.subr.mxu0 0.0
  %93 = vmatpush1.msra.mxu0 0.0
  %94 = vmatprep.subr.mxu0 0.0
  %95 = vmatpush1.msra.mxu0 0.0
  %96 = vmatprep.subr.mxu0 0.0
  %97 = vmatpush1.msra.mxu0 0.0
  %98 = vmatprep.subr.mxu0 0.0
  %99 = vmatpush1.msra.mxu0 0.0
  %100 = vmatprep.subr.mxu0 0.0
  %101 = vmatpush1.msra.mxu0 0.0
  %102 = vmatprep.subr.mxu0 0.0
  %103 = vmatpush1.msra.mxu0 0.0
  %104 = vmatprep.subr.mxu0 0.0
  %105 = vmatpush1.msra.mxu0 0.0
  %106 = vmatprep.subr.mxu0 0.0
  %107 = vmatpush1.msra.mxu0 0.0
  %108 = vmatprep.subr.mxu0 0.0
  %109 = vmatpush1.msra.mxu0 0.0
  %110 = vmatprep.subr.mxu0 0.0
  %111 = vmatpush1.msra.mxu0 0.0
  %112 = vmatprep.subr.mxu0 0.0
  %113 = vmatpush1.msra.mxu0 0.0
  %114 = vmatprep.subr.mxu0 0.0
  %115 = vmatpush1.msra.mxu0 0.0
  %116 = vmatprep.subr.mxu0 0.0
  %117 = vmatpush1.msra.mxu0 %v31
  %118 = vmatprep.subr.mxu0 0.0
  %119 = vmatpush1.msra.mxu0 %v30
  %120 = vmatprep.subr.mxu0 0.0
  %121 = vmatpush2.msra.mxu0 0.0
  %122 = vmatprep.subr.mxu0 0.0
  %123 = vmatpush2.msra.mxu0 0.0
  %124 = vmatprep.subr.mxu0 0.0
  %125 = vmatpush2.msra.mxu0 0.0
  %126 = vmatprep.subr.mxu0 0.0
  %127 = vmatpush2.msra.mxu0 0.0
  %128 = vmatprep.subr.mxu0 0.0
  %129 = vmatpush2.msra.mxu0 0.0
  %130 = vmatprep.subr.mxu0 0.0
  %131 = vmatpush2.msra.mxu0 0.0
  %132 = vmatprep.subr.mxu0 0.0
  %133 = vmatpush2.msra.mxu0 0.0
  %134 = vmatprep.subr.mxu0 0.0
  %135 = vmatpush2.msra.mxu0 0.0
  %136 = vmatprep.subr.mxu0 0.0
  %137 = vmatpush2.msra.mxu0 0.0
  %138 = vmatprep.subr.mxu0 0.0
  %139 = vmatpush2.msra.mxu0 0.0
  %140 = vmatprep.subr.mxu0 0.0
  %141 = vmatpush2.msra.mxu0 0.0
  %142 = vmatprep.subr.mxu0 0.0
  %143 = vmatpush2.msra.mxu0 0.0
  %144 = vmatprep.subr.mxu0 0.0
  %145 = vmatpush2.msra.mxu0 0.0
  %146 = vmatprep.subr.mxu0 0.0
  %147 = vmatpush2.msra.mxu0 0.0
  %148 = vmatprep.subr.mxu0 0.0
  %149 = vmatpush2.msra.mxu0 0.0
  %150 = vmatprep.subr.mxu0 0.0
  %151 = vmatpush2.msra.mxu0 0.0
  %152 = vmatprep.mubr.f32.mxu0 0.0
  %153 = vmatmul.mubr.f32.gmra.mxu0 %v41
  %v154 = vpop.f32.mrf.mxu0
  %v155 = vadd.f32 %v37, %v154
  %v156 = vpop.f32.mrf.mxu0
  %157 = vmatprep.mubr.f32.mxu0 0.0
  %158 = vmatmul.mubr.f32.gmra.mxu0 %v44
  %v159 = vpop.f32.mrf.mxu0
  %v160 = vadd.f32 %v37, %v159
  %v161 = vpop.f32.mrf.mxu0
  %162 = vmatprep.mubr.f32.mxu0 0.0
  %163 = vmatmul.mubr.f32.gmra.mxu0 %v47
  %v164 = vpop.f32.mrf.mxu0
  %v165 = vadd.f32 %v37, %v164
  %v166 = vpop.f32.mrf.mxu0
  %167 = vmatprep.mubr.f32.mxu0 0.0
  %168 = vmatmul.mubr.f32.gmra.mxu0 %v50
  %v169 = vpop.f32.mrf.mxu0
  %v170 = vadd.f32 %v37, %v169
  %v171 = vpop.f32.mrf.mxu0
  %172 = vmatprep.mubr.f32.mxu0 0.0
  %173 = vmatmul.mubr.f32.gmra.mxu0 %v53
  %v174 = vpop.f32.mrf.mxu0
  %v175 = vadd.f32 %v37, %v174
  %v176 = vpop.f32.mrf.mxu0
  %177 = vmatprep.mubr.f32.mxu0 0.0
  %178 = vmatmul.mubr.f32.gmra.mxu0 %v56
  %v179 = vpop.f32.mrf.mxu0
  %v180 = vadd.f32 %v37, %v179
  %v181 = vpop.f32.mrf.mxu0
  %182 = vmatprep.mubr.f32.mxu0 0.0
  %183 = vmatmul.mubr.f32.gmra.mxu0 %v59
  %v184 = vpop.f32.mrf.mxu0
  %v185 = vadd.f32 %v37, %v184
  %v186 = vpop.f32.mrf.mxu0
  %187 = vmatprep.mubr.f32.mxu0 0.0
  %188 = vmatmul.mubr.f32.gmra.mxu0 %v62
  %v189 = vpop.f32.mrf.mxu0
  %v190 = vadd.f32 %v37, %v189
  %v191 = vpop.f32.mrf.mxu0
  %192 = vmatprep.mubr.f32.mxu0 0.0
  %193 = vmatmul.mubr.f32.gmra.mxu0 %v65
  %v194 = vpop.f32.mrf.mxu0
  %v195 = vadd.f32 %v37, %v194
  %v196 = vpop.f32.mrf.mxu0
  %197 = vmatprep.mubr.f32.mxu0 0.0
  %198 = vmatmul.mubr.f32.gmra.mxu0 %v68
  %v199 = vpop.f32.mrf.mxu0
  %v200 = vadd.f32 %v37, %v199
  %v201 = vpop.f32.mrf.mxu0
  %202 = vmatprep.mubr.f32.mxu0 0.0
  %203 = vmatmul.mubr.f32.gmra.mxu0 %v71
  %v204 = vpop.f32.mrf.mxu0
  %v205 = vadd.f32 %v37, %v204
  %v206 = vpop.f32.mrf.mxu0
  %207 = vmatprep.mubr.f32.mxu0 0.0
  %208 = vmatmul.mubr.f32.gmra.mxu0 %v74
  %v209 = vpop.f32.mrf.mxu0
  %v210 = vadd.f32 %v37, %v209
  %v211 = vpop.f32.mrf.mxu0
  %212 = vmatprep.mubr.f32.mxu0 0.0
  %213 = vmatmul.mubr.f32.gmra.mxu0 %v77
  %v214 = vpop.f32.mrf.mxu0
  %v215 = vadd.f32 %v37, %v214
  %v216 = vpop.f32.mrf.mxu0
  %217 = vmatprep.mubr.f32.mxu0 0.0
  %218 = vmatmul.mubr.f32.gmra.mxu0 %v80
  %v219 = vpop.f32.mrf.mxu0
  %v220 = vadd.f32 %v37, %v219
  %v221 = vpop.f32.mrf.mxu0
  %222 = vmatprep.mubr.f32.mxu0 0.0
  %223 = vmatmul.mubr.f32.gmra.mxu0 %v83
  %v224 = vpop.f32.mrf.mxu0
  %v225 = vadd.f32 %v37, %v224
  %v226 = vpop.f32.mrf.mxu0
  %227 = vmatprep.mubr.f32.mxu0 0.0
  %228 = vmatmul.mubr.f32.gmra.mxu0 %v86
  %v229 = vpop.f32.mrf.mxu0
  %v230 = vadd.f32 %v37, %v229
  %v231 = vpop.f32.mrf.mxu0
  %232 = vdwg.mxu0
  %vm233 = vcmask 64512
  %234 = vst.msk [vmem:[%s3] sm:$0xff] %vm233, %v155
  %235 = vst.msk [vmem:[%s3 + $0x8] sm:$0xff] %vm233, %v160
  %236 = vst.msk [vmem:[%s3 + $0x10] sm:$0xff] %vm233, %v165
  %237 = vst.msk [vmem:[%s3 + $0x18] sm:$0xff] %vm233, %v170
  %238 = vst.msk [vmem:[%s3 + $0x20] sm:$0xff] %vm233, %v175
  %239 = vst.msk [vmem:[%s3 + $0x28] sm:$0xff] %vm233, %v180
  %240 = vst.msk [vmem:[%s3 + $0x30] sm:$0xff] %vm233, %v185
  %241 = vst.msk [vmem:[%s3 + $0x38] sm:$0xff] %vm233, %v190
  %242 = vst.msk [vmem:[%s3 + $0x40] sm:$0xff] %vm233, %v195
  %243 = vst.msk [vmem:[%s3 + $0x48] sm:$0xff] %vm233, %v200
  %244 = vst.msk [vmem:[%s3 + $0x50] sm:$0xff] %vm233, %v205
  %245 = vst.msk [vmem:[%s3 + $0x58] sm:$0xff] %vm233, %v210
  %246 = vst.msk [vmem:[%s3 + $0x60] sm:$0xff] %vm233, %v215
  %247 = vst.msk [vmem:[%s3 + $0x68] sm:$0xff] %vm233, %v220
  %248 = vst.msk [vmem:[%s3 + $0x70] sm:$0xff] %vm233, %v225
  %249 = vst.msk [vmem:[%s3 + $0x78] sm:$0xff] %vm233, %v230
  // Predicated region
  $region14: #{tpu_custom_call.1} parent=0 // pred_check
    _
  $region15: #{tpu_custom_call.1} parent=0 // pred_check_branch
    %251 = sbr.rel (0) target = $region17
  $region16: #{tpu_custom_call.1} parent=0 // pred_region
    _
  $region17: #{tpu_custom_call.1} parent=0 // pred_fallthru
    _
  // Predicated region
  $region18: #{tpu_custom_call.1} parent=0 // pred_check
    _
  $region19: #{tpu_custom_call.1} parent=0 // pred_check_branch
    %253 = sbr.rel (0) target = $region21
  $region20: #{tpu_custom_call.1} parent=0 // pred_region
    _
  $region21: #{tpu_custom_call.1} parent=0 // pred_fallthru
    _

</llo_original>
